<compile_context>
chip_gen: v6e
topology: v6e:2x2x1
jax: 0.10.0
libtpu: 0.0.40
codegen_flags: <defaults>
</compile_context>

<pallas_src>
import functools

import jax
import jax.numpy as jnp
from jax.experimental import pallas as pl
from jax.experimental.pallas import tpu as pltpu

LN_EPS = 1e-12


def _round_up(x, m):
    return ((x + m - 1) // m) * m


def _lxmert_output_kernel(x_ref, w_ref, b_ref, res_ref, gamma_ref, beta_ref, o_ref):
    # Dense: cast the streamed activation tile to the MXU compute dtype in-vreg
    # (no wrapper-side HBM pass), accumulate in f32 on the MXU.
    x = x_ref[...].astype(w_ref.dtype)
    h = jnp.dot(x, w_ref[...], preferred_element_type=jnp.float32)

    # Dropout: eval-mode => identity.
    # TODO(synk): training-mode dropout (pltpu.prng_random_bits mask) not implemented.

    # Bias + residual add in f32.
    h = h + res_ref[...].astype(jnp.float32) + b_ref[...]

    # LayerNorm over the hidden (last) axis, eps=1e-12, biased variance (matches torch).
    # One-pass moments + gamma folded into the normalization scale:
    #   out = h * scale + (beta - mean * scale),  scale = gamma * rsqrt(var + eps)
    mean = jnp.mean(h, axis=-1, keepdims=True)
    mean_sq = jnp.mean(h * h, axis=-1, keepdims=True)
    var = jnp.maximum(mean_sq - mean * mean, 0.0)
    scale = gamma_ref[...] * jax.lax.rsqrt(var + LN_EPS)
    o_ref[...] = (h * scale + (beta_ref[...] - mean * scale)).astype(o_ref.dtype)


@functools.partial(jax.jit, static_argnames=("block_rows", "compute_dtype", "out_dtype"))
def lxmert_output(hidden_states, input_tensor, w, b, gamma, beta, *,
                  block_rows=512, compute_dtype=jnp.bfloat16, out_dtype=None):
    """hidden_states: [B, S, I]; input_tensor: [B, S, H]; returns [B, S, H]."""
    B, S, I = hidden_states.shape
    H = input_tensor.shape[-1]
    if out_dtype is None:
        out_dtype = input_tensor.dtype          # match the residual dtype
    rows = B * S

    # Stream activations / residual in their ORIGINAL dtype: no extra HBM cast/pad passes.
    x2d = hidden_states.reshape(rows, I)
    r2d = input_tensor.reshape(rows, H)
    # The weight is small (I*H); cast it once so both its HBM read and its resident VMEM
    # footprint halve. LN params / bias stay f32.
    wc = w.astype(compute_dtype)
    b2d = b.reshape(1, H).astype(jnp.float32)
    g2d = gamma.reshape(1, H).astype(jnp.float32)
    be2d = beta.reshape(1, H).astype(jnp.float32)

    # Row tile: sublane-aligned for the streamed dtype. Ensure >= 2 row tiles when
    # possible so both TensorCores get work on v7x (row axis is "parallel").
    sub = 16 if x2d.dtype == jnp.bfloat16 else 8
    bm = max(sub, min(block_rows, _round_up(rows, sub)))
    if pl.cdiv(rows, bm) < 2 and rows > sub:
        bm = _round_up(pl.cdiv(rows, 2), sub)
    grid = (pl.cdiv(rows, bm),)

    xbytes = x2d.dtype.itemsize
    rbytes = r2d.dtype.itemsize
    cbytes = jnp.dtype(compute_dtype).itemsize
    obytes = jnp.dtype(out_dtype).itemsize

    # VMEM budget: double-buffered x / residual / output tiles, single-buffered resident
    # weight + LN params. Cap below v7x's 64 MiB physical VMEM to leave compiler headroom.
    vmem_bytes = (2 * bm * I * xbytes         # x tile (double-buffered)
                  + I * H * cbytes            # resident dense weight (single-buffered)
                  + 2 * bm * H * rbytes       # residual tile
                  + 2 * bm * H * obytes       # output tile
                  + 3 * H * 4)                # bias / gamma / beta
    vmem_limit = min(max(int(vmem_bytes * 1.3) + (8 << 20), 32 << 20), 48 << 20)

    cost = pl.CostEstimate(
        flops=2 * rows * I * H,
        transcendentals=rows,                 # one rsqrt per row
        bytes_accessed=(rows * I * xbytes + I * H * cbytes + rows * H * rbytes
                        + rows * H * obytes + 3 * H * 4),
    )

    out2d = pl.pallas_call(
        _lxmert_output_kernel,
        out_shape=jax.ShapeDtypeStruct((rows, H), out_dtype),
        grid_spec=pltpu.PrefetchScalarGridSpec(
            num_scalar_prefetch=0,
            grid=grid,
            in_specs=[
                pl.BlockSpec((bm, I), lambda i: (i, 0)),            # x row tile (streamed)
                pl.BlockSpec((I, H), lambda i: (0, 0),
                             pipeline_mode=pl.Buffered(1)),          # resident dense weight
                pl.BlockSpec((1, H), lambda i: (0, 0),
                             pipeline_mode=pl.Buffered(1)),          # dense bias
                pl.BlockSpec((bm, H), lambda i: (i, 0)),             # residual row tile
                pl.BlockSpec((1, H), lambda i: (0, 0),
                             pipeline_mode=pl.Buffered(1)),          # LN gamma
                pl.BlockSpec((1, H), lambda i: (0, 0),
                             pipeline_mode=pl.Buffered(1)),          # LN beta
            ],
            out_specs=pl.BlockSpec((bm, H), lambda i: (i, 0)),
        ),
        compiler_params=pltpu.CompilerParams(
            dimension_semantics=("parallel",),
            vmem_limit_bytes=vmem_limit,
        ),
        cost_estimate=cost,
    )(x2d, wc, b2d, r2d, g2d, be2d)

    return out2d.reshape(B, S, H)


def _reference(hidden_states, input_tensor, w, b, gamma, beta,
               compute_dtype=jnp.bfloat16):
    # Same numerics path as the kernel: bf16 matmul operands, f32 accumulation,
    # f32 LayerNorm epilogue (two-pass variance).
    h = jnp.einsum("bsi,ih->bsh", hidden_states.astype(compute_dtype),
                   w.astype(compute_dtype), preferred_element_type=jnp.float32)
    h = h + b.astype(jnp.float32) + input_tensor.astype(jnp.float32)
    mean = jnp.mean(h, axis=-1, keepdims=True)
    var = jnp.mean(jnp.square(h - mean), axis=-1, keepdims=True)
    out = (h - mean) * jax.lax.rsqrt(var + LN_EPS)
    out = out * gamma.astype(jnp.float32) + beta.astype(jnp.float32)
    return out.astype(input_tensor.dtype)


if __name__ == "__main__":
    # Small config: intermediate_size=64, hidden_size=32, batch=2, seq=8.
    # (Real LXMERT is I=3072, H=768 — lane-dense; these demo dims are below 128 lanes.)
    B, S, I, H = 2, 8, 64, 32
    key = jax.random.PRNGKey(0)
    k1, k2, k3, k4, k5 = jax.random.split(key, 5)

    hidden_states = jax.random.normal(k1, (B, S, I), dtype=jnp.float32)
    input_tensor = jax.random.normal(k2, (B, S, H), dtype=jnp.float32)

    # Deterministic parameter init (synthetic; matches nn.Linear / nn.LayerNorm shapes).
    w = jax.random.normal(k3, (I, H), dtype=jnp.float32) * 0.02   # dense.weight.T
    b = jax.random.normal(k4, (H,), dtype=jnp.float32) * 0.02     # dense.bias
    gamma = 1.0 + 0.1 * jax.random.normal(k5, (H,), dtype=jnp.float32)  # LayerNorm.weight
    beta = jnp.linspace(-0.1, 0.1, H, dtype=jnp.float32)                # LayerNorm.bias

    out = lxmert_output(hidden_states, input_tensor, w, b, gamma, beta)
    jax.block_until_ready(out)

    ref = _reference(hidden_states, input_tensor, w, b, gamma, beta)
    assert out.shape == (B, S, H)
    assert jnp.allclose(out, ref, atol=1e-2, rtol=1e-2), "mismatch vs reference"

    print("KERNEL_OK")
</pallas_src>

<mosaic_0001>
module attributes {stable_mosaic.version = 11 : i64} {
  func.func @_lxmert_output_kernel(%arg0: i32, %arg1: memref<8x64xf32, #tpu.memory_space<vmem>>, %arg2: memref<64x32xbf16, #tpu.memory_space<vmem>>, %arg3: memref<1x32xf32, #tpu.memory_space<vmem>>, %arg4: memref<8x32xf32, #tpu.memory_space<vmem>>, %arg5: memref<1x32xf32, #tpu.memory_space<vmem>>, %arg6: memref<1x32xf32, #tpu.memory_space<vmem>>, %arg7: memref<8x32xf32, #tpu.memory_space<vmem>>) attributes {dimension_semantics = [#tpu.dimension_semantics<parallel>], iteration_bounds = array<i64: 2>, scalar_prefetch = 0 : i64, scratch_operands = 0 : i64, tpu.core_type = #tpu.core_type<tc>, window_params = [{transform_indices = @transform_0, window_bounds = array<i64: 8, 64>}, {pipeline_mode = #tpu.pipeline_mode<synchronous>, transform_indices = @transform_1, window_bounds = array<i64: 64, 32>}, {pipeline_mode = #tpu.pipeline_mode<synchronous>, transform_indices = @transform_2, window_bounds = array<i64: 1, 32>}, {transform_indices = @transform_3, window_bounds = array<i64: 8, 32>}, {pipeline_mode = #tpu.pipeline_mode<synchronous>, transform_indices = @transform_4, window_bounds = array<i64: 1, 32>}, {pipeline_mode = #tpu.pipeline_mode<synchronous>, transform_indices = @transform_5, window_bounds = array<i64: 1, 32>}, {transform_indices = @transform_6, window_bounds = array<i64: 8, 32>}]} {
    %c0 = arith.constant 0 : index
    %c0_0 = arith.constant 0 : index
    %0 = vector.load %arg1[%c0, %c0_0] : memref<8x64xf32, #tpu.memory_space<vmem>>, vector<8x64xf32>
    %1 = arith.truncf %0 : vector<8x64xf32> to vector<8x64xbf16>
    %c0_1 = arith.constant 0 : index
    %c0_2 = arith.constant 0 : index
    %2 = vector.load %arg2[%c0_1, %c0_2] : memref<64x32xbf16, #tpu.memory_space<vmem>>, vector<64x32xbf16>
    %cst = arith.constant dense<0.000000e+00> : vector<8x32xf32>
    %3 = tpu.matmul %1, %2, %cst {dimension_numbers = #tpu.dot_dimension_numbers<[1], [0], [0], [1], [0, 0, 1, 1], [], []>} : vector<8x64xbf16>, vector<64x32xbf16>, vector<8x32xf32> -> vector<8x32xf32>
    %c0_3 = arith.constant 0 : index
    %c0_4 = arith.constant 0 : index
    %4 = vector.load %arg4[%c0_3, %c0_4] : memref<8x32xf32, #tpu.memory_space<vmem>>, vector<8x32xf32>
    %5 = arith.addf %3, %4 : vector<8x32xf32>
    %c0_5 = arith.constant 0 : index
    %c0_6 = arith.constant 0 : index
    %6 = vector.load %arg3[%c0_5, %c0_6] : memref<1x32xf32, #tpu.memory_space<vmem>>, vector<1x32xf32>
    %7 = vector.broadcast %6 : vector<1x32xf32> to vector<8x32xf32>
    %8 = arith.addf %5, %7 : vector<8x32xf32>
    %cst_7 = arith.constant dense<0.000000e+00> : vector<8xf32>
    %9 = vector.multi_reduction <add>, %8, %cst_7 [1] : vector<8x32xf32> to vector<8xf32>
    %10 = vector.shape_cast %9 : vector<8xf32> to vector<8x1xf32>
    %cst_8 = arith.constant 3.200000e+01 : f32
    %11 = vector.broadcast %cst_8 : f32 to vector<8x1xf32>
    %12 = arith.divf %10, %11 : vector<8x1xf32>
    %13 = arith.mulf %8, %8 : vector<8x32xf32>
    %cst_9 = arith.constant dense<0.000000e+00> : vector<8xf32>
    %14 = vector.multi_reduction <add>, %13, %cst_9 [1] : vector<8x32xf32> to vector<8xf32>
    %15 = vector.shape_cast %14 : vector<8xf32> to vector<8x1xf32>
    %cst_10 = arith.constant 3.200000e+01 : f32
    %16 = vector.broadcast %cst_10 : f32 to vector<8x1xf32>
    %17 = arith.divf %15, %16 : vector<8x1xf32>
    %18 = arith.mulf %12, %12 : vector<8x1xf32>
    %19 = arith.subf %17, %18 : vector<8x1xf32>
    %cst_11 = arith.constant 0.000000e+00 : f32
    %20 = vector.broadcast %cst_11 : f32 to vector<8x1xf32>
    %21 = arith.maximumf %19, %20 : vector<8x1xf32>
    %c0_12 = arith.constant 0 : index
    %c0_13 = arith.constant 0 : index
    %22 = vector.load %arg5[%c0_12, %c0_13] : memref<1x32xf32, #tpu.memory_space<vmem>>, vector<1x32xf32>
    %cst_14 = arith.constant 9.99999996E-13 : f32
    %23 = vector.broadcast %cst_14 : f32 to vector<8x1xf32>
    %24 = arith.addf %21, %23 : vector<8x1xf32>
    %25 = math.rsqrt %24 : vector<8x1xf32>
    %26 = vector.broadcast %22 : vector<1x32xf32> to vector<8x32xf32>
    %27 = vector.broadcast %25 : vector<8x1xf32> to vector<8x32xf32>
    %28 = arith.mulf %26, %27 : vector<8x32xf32>
    %29 = arith.mulf %8, %28 : vector<8x32xf32>
    %c0_15 = arith.constant 0 : index
    %c0_16 = arith.constant 0 : index
    %30 = vector.load %arg6[%c0_15, %c0_16] : memref<1x32xf32, #tpu.memory_space<vmem>>, vector<1x32xf32>
    %31 = vector.broadcast %12 : vector<8x1xf32> to vector<8x32xf32>
    %32 = arith.mulf %31, %28 : vector<8x32xf32>
    %33 = vector.broadcast %30 : vector<1x32xf32> to vector<8x32xf32>
    %34 = arith.subf %33, %32 : vector<8x32xf32>
    %35 = arith.addf %29, %34 : vector<8x32xf32>
    %c0_17 = arith.constant 0 : index
    %c0_18 = arith.constant 0 : index
    %36 = vector.load %arg7[%c0_17, %c0_18] : memref<8x32xf32, #tpu.memory_space<vmem>>, vector<8x32xf32>
    tpu.vector_store %arg7[%c0_17, %c0_18], %35 {strides = array<i32>} : memref<8x32xf32, #tpu.memory_space<vmem>>, vector<8x32xf32>,
    return
  }
  func.func @transform_0(%arg0: i32) -> (i32, i32) {
    %c0_i32 = arith.constant 0 : i32
    %c0_i32_0 = arith.constant 0 : i32
    return %arg0, %c0_i32 : i32, i32
  }
  func.func @transform_1(%arg0: i32) -> (i32, i32) {
    %c0_i32 = arith.constant 0 : i32
    %c0_i32_0 = arith.constant 0 : i32
    %c0_i32_1 = arith.constant 0 : i32
    return %c0_i32, %c0_i32_0 : i32, i32
  }
  func.func @transform_2(%arg0: i32) -> (i32, i32) {
    %c0_i32 = arith.constant 0 : i32
    %c0_i32_0 = arith.constant 0 : i32
    %c0_i32_1 = arith.constant 0 : i32
    return %c0_i32, %c0_i32_0 : i32, i32
  }
  func.func @transform_3(%arg0: i32) -> (i32, i32) {
    %c0_i32 = arith.constant 0 : i32
    %c0_i32_0 = arith.constant 0 : i32
    return %arg0, %c0_i32 : i32, i32
  }
  func.func @transform_4(%arg0: i32) -> (i32, i32) {
    %c0_i32 = arith.constant 0 : i32
    %c0_i32_0 = arith.constant 0 : i32
    %c0_i32_1 = arith.constant 0 : i32
    return %c0_i32, %c0_i32_0 : i32, i32
  }
  func.func @transform_5(%arg0: i32) -> (i32, i32) {
    %c0_i32 = arith.constant 0 : i32
    %c0_i32_0 = arith.constant 0 : i32
    %c0_i32_1 = arith.constant 0 : i32
    return %c0_i32, %c0_i32_0 : i32, i32
  }
  func.func @transform_6(%arg0: i32) -> (i32, i32) {
    %c0_i32 = arith.constant 0 : i32
    %c0_i32_0 = arith.constant 0 : i32
    return %arg0, %c0_i32 : i32, i32
  }
}

</mosaic_0001>

<llo_original>
// kernel: lxmert_output.1
$region0: #{lxmert_output.1}
  #allocation0 [shape = 'u32[]', space=smem, size = 0x4, offset = 0x4, fixed_abs, tag = 'smem constant byte address 0x4 - core index']
  #allocation1 [shape = 'u32[144,128]{1,0:T(1,128)}', space=vmem, size = 0x12000, scoped, tag = 'internal scratch']
  %s0 = inlined_call_operand.vmem [shape: f32[16,64], index: 0, kind: input, shape index: {}]
  %s1 = inlined_call_operand.vmem [shape: bf16[64,32], index: 1, kind: input, shape index: {}]
  %s2 = inlined_call_operand.vmem [shape: f32[1,32], index: 2, kind: input, shape index: {}]
  %s3 = inlined_call_operand.vmem [shape: f32[16,32], index: 3, kind: input, shape index: {}]
  %s4 = inlined_call_operand.vmem [shape: f32[1,32], index: 4, kind: input, shape index: {}]
  %s5 = inlined_call_operand.vmem [shape: f32[1,32], index: 5, kind: input, shape index: {}]
  %s6 = inlined_call_operand.hbm [shape: f32[16,32], index: 6, kind: output, shape index: {}]
  %s7 = sld [smem:[#allocation0]]
  $region57: #{lxmert_output.1} parent=0
    _
  %s9 = ssub.s32 1, %s7
  %s10 = scalar_select 0, %s9, %s7
  $region1: #{lxmert_output.1} parent=0
    #allocation2 [shape = 'u8[8192]{0}', space=vmem, size = 0x2000, scoped, tag = 'output window, operand 0']
    #allocation3 [shape = 's32[2]{0}', space=sflag, size = 0x8, scoped, tag = 'scoped memory for lxmert_output.1']
    %11 = vsyncpa [#allocation3], 0
    %s12 = scalar_lea.sflag [#allocation3], 1
    %13 = vsyncpa %s12, 0
    loop: start=0, step=1, limit=4
    $region2: #{lxmert_output.1} parent=1 // loop_pre_header
      _
    $region3: #{lxmert_output.1} parent=1 // loop_header
      %s15 = sphi 0, %s19
      %p16 = scmp.ge.s32.totalorder %s15, 4
      %s25 = sphi 0, %s27
      %s28 = sphi 0, %s25
      %s29 = sphi 0, %s28
      %s45 = sphi 0, %s29
      %s49 = sphi 0, %s49
      %s51 = sphi 0, %s49
      %s52 = sphi 0, %s51
      %s66 = sphi 0, %s52
      %s70 = sphi 0, %s70
      %s72 = sphi 0, %s70
      %s73 = sphi 0, %s72
      %s87 = sphi 0, %s73
      %s93 = sphi 0, %s95
      %s96 = sphi 0, %s93
      %s97 = sphi 0, %s96
      %s113 = sphi 0, %s97
      %s117 = sphi 0, %s117
      %s119 = sphi 0, %s117
      %s120 = sphi 0, %s119
      %s134 = sphi 0, %s120
      %s138 = sphi 0, %s138
      %s140 = sphi 0, %s138
      %s141 = sphi 0, %s140
      %s155 = sphi 0, %s141
      %s161 = sphi 0, %s163
      %s164 = sphi 0, %s161
      %s165 = sphi 0, %s164
      %s181 = sphi 0, %s165
    $region4: #{lxmert_output.1} parent=1 // loop_header_branch
      %18 = sbr.rel (%p16) target = $region8
    $region5: #{lxmert_output.1} parent=1 // loop_body
      %s20 = ssub.s32 %s15, 1
      %s21 = ssub.s32 %s15, 2
      %s22 = sadd.s32 %s15, 1
      %s23 = ssub.s32 %s15, %s22
      %p24 = scmp.eq.s32.totalorder %s23, 0
      %s26 = sadd.s32 %s25, 1
      %s27 = scalar_select %p24, %s25, %s26
      %p30 = pneg %p24
      %p31 = scmp.eq.s32.totalorder %s15, 1
      %p32 = por %p30, %p31
      %p33 = scmp.ne.s32.totalorder %s25, %s28
      %p34 = scmp.eq.s32.totalorder %s15, 0
      %p35 = por %p33, %p34
      %p36 = scmp.ne.s32.totalorder %s25, %s28
      %p37 = scmp.eq.s32.totalorder %s20, 1
      %p38 = por %p36, %p37
      %p39 = scmp.ne.s32.totalorder %s28, %s29
      %p40 = scmp.eq.s32.totalorder %s20, 0
      %p41 = por %p39, %p40
      %p42 = scmp.ne.s32.totalorder %s28, %s29
      %p43 = scmp.eq.s32.totalorder %s21, 1
      %p44 = por %p42, %p43
      %p46 = scmp.ne.s32.totalorder %s29, %s45
      %p47 = scmp.eq.s32.totalorder %s21, 0
      %p48 = por %p46, %p47
      %s50 = sadd.s32 %s49, 1
      %p53 = scmp.eq.s32.totalorder %s15, 1
      %p54 = scmp.ne.s32.totalorder %s49, %s51
      %p55 = scmp.eq.s32.totalorder %s15, 0
      %p56 = por %p54, %p55
      %p57 = scmp.ne.s32.totalorder %s49, %s51
      %p58 = scmp.eq.s32.totalorder %s20, 1
      %p59 = por %p57, %p58
      %p60 = scmp.ne.s32.totalorder %s51, %s52
      %p61 = scmp.eq.s32.totalorder %s20, 0
      %p62 = por %p60, %p61
      %p63 = scmp.ne.s32.totalorder %s51, %s52
      %p64 = scmp.eq.s32.totalorder %s21, 1
      %p65 = por %p63, %p64
      %p67 = scmp.ne.s32.totalorder %s52, %s66
      %p68 = scmp.eq.s32.totalorder %s21, 0
      %p69 = por %p67, %p68
      %s71 = sadd.s32 %s70, 1
      %p74 = scmp.eq.s32.totalorder %s15, 1
      %p75 = scmp.ne.s32.totalorder %s70, %s72
      %p76 = scmp.eq.s32.totalorder %s15, 0
      %p77 = por %p75, %p76
      %p78 = scmp.ne.s32.totalorder %s70, %s72
      %p79 = scmp.eq.s32.totalorder %s20, 1
      %p80 = por %p78, %p79
      %p81 = scmp.ne.s32.totalorder %s72, %s73
      %p82 = scmp.eq.s32.totalorder %s20, 0
      %p83 = por %p81, %p82
      %p84 = scmp.ne.s32.totalorder %s72, %s73
      %p85 = scmp.eq.s32.totalorder %s21, 1
      %p86 = por %p84, %p85
      %p88 = scmp.ne.s32.totalorder %s73, %s87
      %p89 = scmp.eq.s32.totalorder %s21, 0
      %p90 = por %p88, %p89
      %s91 = ssub.s32 %s15, %s22
      %p92 = scmp.eq.s32.totalorder %s91, 0
      %s94 = sadd.s32 %s93, 1
      %s95 = scalar_select %p92, %s93, %s94
      %p98 = pneg %p92
      %p99 = scmp.eq.s32.totalorder %s15, 1
      %p100 = por %p98, %p99
      %p101 = scmp.ne.s32.totalorder %s93, %s96
      %p102 = scmp.eq.s32.totalorder %s15, 0
      %p103 = por %p101, %p102
      %p104 = scmp.ne.s32.totalorder %s93, %s96
      %p105 = scmp.eq.s32.totalorder %s20, 1
      %p106 = por %p104, %p105
      %p107 = scmp.ne.s32.totalorder %s96, %s97
      %p108 = scmp.eq.s32.totalorder %s20, 0
      %p109 = por %p107, %p108
      %p110 = scmp.ne.s32.totalorder %s96, %s97
      %p111 = scmp.eq.s32.totalorder %s21, 1
      %p112 = por %p110, %p111
      %p114 = scmp.ne.s32.totalorder %s97, %s113
      %p115 = scmp.eq.s32.totalorder %s21, 0
      %p116 = por %p114, %p115
      %s118 = sadd.s32 %s117, 1
      %p121 = scmp.eq.s32.totalorder %s15, 1
      %p122 = scmp.ne.s32.totalorder %s117, %s119
      %p123 = scmp.eq.s32.totalorder %s15, 0
      %p124 = por %p122, %p123
      %p125 = scmp.ne.s32.totalorder %s117, %s119
      %p126 = scmp.eq.s32.totalorder %s20, 1
      %p127 = por %p125, %p126
      %p128 = scmp.ne.s32.totalorder %s119, %s120
      %p129 = scmp.eq.s32.totalorder %s20, 0
      %p130 = por %p128, %p129
      %p131 = scmp.ne.s32.totalorder %s119, %s120
      %p132 = scmp.eq.s32.totalorder %s21, 1
      %p133 = por %p131, %p132
      %p135 = scmp.ne.s32.totalorder %s120, %s134
      %p136 = scmp.eq.s32.totalorder %s21, 0
      %p137 = por %p135, %p136
      %s139 = sadd.s32 %s138, 1
      %p142 = scmp.eq.s32.totalorder %s15, 1
      %p143 = scmp.ne.s32.totalorder %s138, %s140
      %p144 = scmp.eq.s32.totalorder %s15, 0
      %p145 = por %p143, %p144
      %p146 = scmp.ne.s32.totalorder %s138, %s140
      %p147 = scmp.eq.s32.totalorder %s20, 1
      %p148 = por %p146, %p147
      %p149 = scmp.ne.s32.totalorder %s140, %s141
      %p150 = scmp.eq.s32.totalorder %s20, 0
      %p151 = por %p149, %p150
      %p152 = scmp.ne.s32.totalorder %s140, %s141
      %p153 = scmp.eq.s32.totalorder %s21, 1
      %p154 = por %p152, %p153
      %p156 = scmp.ne.s32.totalorder %s141, %s155
      %p157 = scmp.eq.s32.totalorder %s21, 0
      %p158 = por %p156, %p157
      %s159 = ssub.s32 %s15, %s22
      %p160 = scmp.eq.s32.totalorder %s159, 0
      %s162 = sadd.s32 %s161, 1
      %s163 = scalar_select %p160, %s161, %s162
      %p166 = pneg %p160
      %p167 = scmp.eq.s32.totalorder %s15, 1
      %p168 = por %p166, %p167
      %p169 = scmp.ne.s32.totalorder %s161, %s164
      %p170 = scmp.eq.s32.totalorder %s15, 0
      %p171 = por %p169, %p170
      %p172 = scmp.ne.s32.totalorder %s161, %s164
      %p173 = scmp.eq.s32.totalorder %s20, 1
      %p174 = por %p172, %p173
      %p175 = scmp.ne.s32.totalorder %s164, %s165
      %p176 = scmp.eq.s32.totalorder %s20, 0
      %p177 = por %p175, %p176
      %p178 = scmp.ne.s32.totalorder %s164, %s165
      %p179 = scmp.eq.s32.totalorder %s21, 1
      %p180 = por %p178, %p179
      %p182 = scmp.ne.s32.totalorder %s165, %s181
      %p183 = scmp.eq.s32.totalorder %s21, 0
      %p184 = por %p182, %p183
      %p185 = scmp.le.s32.totalorder 1, %s15
      %p186 = scmp.lt.s32.totalorder %s15, 3
      %p187 = pnand %p185, %p186
      %p188 = pneg %p187
      // Predicated region
      $region9: #{lxmert_output.1} parent=5 // pred_check
        _
      $region10: #{lxmert_output.1} parent=5 // pred_check_branch
        %190 = sbr.rel (%p187) target = $region12
      $region11: #{lxmert_output.1} parent=5 // pred_region
        %s191 = ssub.s32 %s15, 1
        // Predicated region
        $region13: #{lxmert_output.1} parent=11 // pred_check
          %p192 = pneg %p62
        $region14: #{lxmert_output.1} parent=11 // pred_check_branch
          %194 = sbr.rel (%p192) target = $region16
        $region15: #{lxmert_output.1} parent=11 // pred_region
          _
        $region16: #{lxmert_output.1} parent=11 // pred_fallthru
          _
        // Predicated region
        $region17: #{lxmert_output.1} parent=11 // pred_check
          %p195 = pneg %p83
        $region18: #{lxmert_output.1} parent=11 // pred_check_branch
          %197 = sbr.rel (%p195) target = $region20
        $region19: #{lxmert_output.1} parent=11 // pred_region
          _
        $region20: #{lxmert_output.1} parent=11 // pred_fallthru
          _
        // Predicated region
        $region21: #{lxmert_output.1} parent=11 // pred_check
          %p198 = pneg %p130
        $region22: #{lxmert_output.1} parent=11 // pred_check_branch
          %200 = sbr.rel (%p198) target = $region24
        $region23: #{lxmert_output.1} parent=11 // pred_region
          _
        $region24: #{lxmert_output.1} parent=11 // pred_fallthru
          _
        // Predicated region
        $region25: #{lxmert_output.1} parent=11 // pred_check
          %p201 = pneg %p151
        $region26: #{lxmert_output.1} parent=11 // pred_check_branch
          %203 = sbr.rel (%p201) target = $region28
        $region27: #{lxmert_output.1} parent=11 // pred_region
          _
        $region28: #{lxmert_output.1} parent=11 // pred_fallthru
          _
      $region12: #{lxmert_output.1} parent=5 // pred_fallthru
        _
      %p204 = scmp.lt.s32.totalorder %s15, 2
      // Predicated region
      $region29: #{lxmert_output.1} parent=5 // pred_check
        %p205 = pneg %p204
      $region30: #{lxmert_output.1} parent=5 // pred_check_branch
        %207 = sbr.rel (%p205) target = $region32
      $region31: #{lxmert_output.1} parent=5 // pred_region
        // Predicated region
        $region33: #{lxmert_output.1} parent=31 // pred_check
          %p208 = pneg %p35
        $region34: #{lxmert_output.1} parent=31 // pred_check_branch
          %210 = sbr.rel (%p208) target = $region36
        $region35: #{lxmert_output.1} parent=31 // pred_region
          %p211 = scmp.lt.s32.totalorder %s15, 1
          %s212 = scalar_select %p211, %s15, 1
          %s213 = smul.addr %s212, 8
          %s214 = scalar_lea.vmem %s0, %s213
        $region36: #{lxmert_output.1} parent=31 // pred_fallthru
          _
        // Predicated region
        $region37: #{lxmert_output.1} parent=31 // pred_check
          %p215 = pneg %p103
        $region38: #{lxmert_output.1} parent=31 // pred_check_branch
          %217 = sbr.rel (%p215) target = $region40
        $region39: #{lxmert_output.1} parent=31 // pred_region
          %p218 = scmp.lt.s32.totalorder %s15, 1
          %s219 = scalar_select %p218, %s15, 1
          %s220 = smul.addr %s219, 8
          %s221 = scalar_lea.vmem %s3, %s220
        $region40: #{lxmert_output.1} parent=31 // pred_fallthru
          _
      $region32: #{lxmert_output.1} parent=5 // pred_fallthru
        _
      %p222 = scmp.le.s32.totalorder 1, %s15
      %p223 = scmp.lt.s32.totalorder %s15, 3
      %p224 = pnand %p222, %p223
      %p225 = pneg %p224
      // Predicated region
      $region41: #{lxmert_output.1} parent=5 // pred_check
        _
      $region42: #{lxmert_output.1} parent=5 // pred_check_branch
        %227 = sbr.rel (%p224) target = $region44
      $region43: #{lxmert_output.1} parent=5 // pred_region
        %s228 = ssub.s32 %s15, 1
        %p229 = scmp.lt.s32.totalorder %s20, 1
        %s230 = scalar_select %p229, %s20, 1
        %s231 = smul.addr %s230, 8
        %s232 = scalar_lea.vmem %s0, %s231
        %p233 = pneg %p41
        %p234 = pneg %p38
        %p235 = pneg %p62
        %p236 = pneg %p59
        %p237 = pneg %p83
        %p238 = pneg %p80
        %p239 = scmp.lt.s32.totalorder %s20, 1
        %s240 = scalar_select %p239, %s20, 1
        %s241 = smul.addr %s240, 8
        %s242 = scalar_lea.vmem %s3, %s241
        %p243 = pneg %p109
        %p244 = pneg %p106
        %p245 = pneg %p130
        %p246 = pneg %p127
        %p247 = pneg %p151
        %p248 = pneg %p148
        %p249 = pneg %p177
        %p250 = pneg %p174
        %s251 = sand.u32 %s164, 1
        %s252 = scalar_lea.sflag [#allocation3], %s251
        %s253 = sand.u32 %s164, 1
        %s254 = smul.addr %s253, 8
        %s255 = scalar_lea.vmem [#allocation2], %s254
        %p256 = scmp.lt.s32.totalorder %s20, 1
        %s257 = scalar_select %p256, %s20, 1
        %s258 = smul.addr %s257, 8
        %s259 = scalar_lea.vmem %s0, %s258
        %p260 = scmp.lt.s32.totalorder %s20, 1
        %s261 = scalar_select %p260, %s20, 1
        %s262 = smul.addr %s261, 8
        %s263 = scalar_lea.vmem %s3, %s262
        %v265 = vld [vmem:[%s259] sm:$0xff]
        %v266 = vpack.c.bf16 %v265, %v265
        %v267 = vld [vmem:[%s1] sm:$0xf]
        %v268 = vld [vmem:[%s1 + $0x4] sm:$0xf]
        %v269 = vld [vmem:[%s1 + $0x8] sm:$0xf]
        %v270 = vld [vmem:[%s1 + $0xc] sm:$0xf]
        %v271 = vld [vmem:[%s1 + $0x10] sm:$0xf]
        %v272 = vld [vmem:[%s1 + $0x14] sm:$0xf]
        %v273 = vld [vmem:[%s1 + $0x18] sm:$0xf]
        %v274 = vld [vmem:[%s1 + $0x1c] sm:$0xf]
        %v275 = vld [vmem:[%s263] sm:$0xff]
        %v284 = vunpack.c.l.b16 %v267
        %v285 = vunpack.c.l.b16 %v268
        %v286 = vunpack.c.l.b16 %v269
        %v287 = vunpack.c.l.b16 %v270
        %v288 = vunpack.c.l.b16 %v271
        %v289 = vunpack.c.l.b16 %v272
        %v290 = vunpack.c.l.b16 %v273
        %v291 = vunpack.c.l.b16 %v274
        %v292 = vpack.c.b16 %v285, %v284
        %v293 = vpack.c.b16 %v287, %v286
        %v294 = vpack.c.b16 %v289, %v288
        %v295 = vpack.c.b16 %v291, %v290
        %vm300 = vcmask 523264
        %v302 = vsel %vm300, %v266, 0
        %304 = vmatprep.subr.bf16.mxu0 0
        %305 = vmatpush1.bf16.msra.mxu0 0
        %306 = vmatprep.subr.bf16.mxu0 0
        %307 = vmatpush1.bf16.msra.mxu0 0
        %308 = vmatprep.subr.bf16.mxu0 0
        %309 = vmatpush1.bf16.msra.mxu0 0
        %310 = vmatprep.subr.bf16.mxu0 0
        %311 = vmatpush1.bf16.msra.mxu0 0
        %312 = vmatprep.subr.bf16.mxu0 0
        %313 = vmatpush1.bf16.msra.mxu0 %v295
        %314 = vmatprep.subr.bf16.mxu0 0
        %315 = vmatpush1.bf16.msra.mxu0 %v294
        %316 = vmatprep.subr.bf16.mxu0 0
        %317 = vmatpush1.bf16.msra.mxu0 %v293
        %318 = vmatprep.subr.bf16.mxu0 0
        %319 = vmatpush1.bf16.msra.mxu0 %v292
        %320 = vmatprep.subr.bf16.mxu0 0
        %321 = vmatpush2.bf16.msra.mxu0 0
        %322 = vmatprep.subr.bf16.mxu0 0
        %323 = vmatpush2.bf16.msra.mxu0 0
        %324 = vmatprep.subr.bf16.mxu0 0
        %325 = vmatpush2.bf16.msra.mxu0 0
        %326 = vmatprep.subr.bf16.mxu0 0
        %327 = vmatpush2.bf16.msra.mxu0 0
        %328 = vmatprep.subr.bf16.mxu0 0
        %329 = vmatpush2.bf16.msra.mxu0 0
        %330 = vmatprep.subr.bf16.mxu0 0
        %331 = vmatpush2.bf16.msra.mxu0 0
        %332 = vmatprep.subr.bf16.mxu0 0
        %333 = vmatpush2.bf16.msra.mxu0 0
        %334 = vmatprep.subr.bf16.mxu0 0
        %335 = vmatpush2.bf16.msra.mxu0 0
        %336 = vmatprep.mubr.bf16.mxu0 0
        %337 = vmatmul.mubr.bf16.gmra.mxu0 %v302
        %v338 = vpop.f32.mrf.mxu0
        %v339 = vadd.f32 %v275, %v338
        %v340 = vpop.f32.mrf.mxu0
        %v341 = vpop.f32.mrf.mxu0
        %v342 = vpop.f32.mrf.mxu0
        %343 = vdwg.mxu0
        %v344 = vld [vmem:[%s2] sm:$0x1]
        %v346 = vlaneseq
        %v347 = vshrl.u32 %v346, 7
        %v348 = vsub.s32 0, %v347
        %v349 = vrot.slane %v344, %v348
        %v351 = vadd.f32 %v339, %v349
        %vm352 = vcmask 261120
        %v353 = vsel %vm352, %v351, 0.0
        %354 = vadd.xlane.f32.xlu0 %v353
        %v355 = vpop.xlane.xlu0 %354
        %v356 = vrcp.pop 32.0
        %v357 = vmul.f32 %v355, %v356
        %v358 = vmul.f32 %v351, %v351
        %v359 = vsel %vm352, %v358, 0.0
        %360 = vadd.xlane.f32.xlu0 %v359
        %v361 = vpop.xlane.xlu0 %360
        %v362 = vmul.f32 %v361, %v356
        %v363 = vmul.f32 %v357, %v357
        %v364 = vsub.f32 %v362, %v363
        %v365 = vmax.f32 %v364, 0.0
        %v366 = vld [vmem:[%s4] sm:$0x1]
        %v367 = vadd.f32 %v365, 1e-12
        %v368 = vrsqrt.pop %v367
        %v370 = vlaneseq
        %v371 = vshrl.u32 %v370, 7
        %v372 = vsub.s32 0, %v371
        %v373 = vrot.slane %v366, %v372
        %v375 = vmul.f32 %v373, %v368
        %v376 = vmul.f32 %v351, %v375
        %v377 = vld [vmem:[%s5] sm:$0x1]
        %v378 = vmul.f32 %v357, %v375
        %v380 = vlaneseq
        %v381 = vshrl.u32 %v380, 7
        %v382 = vsub.s32 0, %v381
        %v383 = vrot.slane %v377, %v382
        %v385 = vsub.f32 %v383, %v378
        %v386 = vadd.f32 %v376, %v385
        %387 = vst.msk [vmem:[%s255] sm:$0xff] %vm352, %v386
        %s388 = sand.u32 %s164, 1
        %s389 = scalar_lea.sflag [#allocation3], %s388
        %s390 = sand.u32 %s164, 1
        %s391 = smul.addr %s390, 8
        %s392 = scalar_lea.vmem [#allocation2], %s391
        // Predicated region
        $region45: #{lxmert_output.1} parent=43 // pred_check
          %p393 = pneg %p174
        $region46: #{lxmert_output.1} parent=43 // pred_check_branch
          %395 = sbr.rel (%p393) target = $region48
        $region47: #{lxmert_output.1} parent=43 // pred_region
          %s397 = ssub.s32 128, 128
          %398 = vsyncadd %s389, %s397
          %s399 = smul.addr %s20, 128
          %s400 = scalar_lea.hbm %s6, %s399
          %s402 = sshll.u32 %s392, 4
          %s403 = int_to_ptr.vmem [resolvable:$true] %s402
          %405 = dma.vmem_to_hbm [thread:$0]  %s403, 128, %s400, %s389
        $region48: #{lxmert_output.1} parent=43 // pred_fallthru
          _
      $region44: #{lxmert_output.1} parent=5 // pred_fallthru
        _
      %p406 = scmp.le.s32.totalorder 2, %s15
      // Predicated region
      $region49: #{lxmert_output.1} parent=5 // pred_check
        %p407 = pneg %p406
      $region50: #{lxmert_output.1} parent=5 // pred_check_branch
        %409 = sbr.rel (%p407) target = $region52
      $region51: #{lxmert_output.1} parent=5 // pred_region
        %s410 = ssub.s32 %s15, 2
        // Predicated region
        $region53: #{lxmert_output.1} parent=51 // pred_check
          %p411 = pneg %p180
        $region54: #{lxmert_output.1} parent=51 // pred_check_branch
          %413 = sbr.rel (%p411) target = $region56
        $region55: #{lxmert_output.1} parent=51 // pred_region
          %s414 = sand.u32 %s165, 1
          %s415 = scalar_lea.sflag [#allocation3], %s414
          %s416 = sand.u32 %s165, 1
          %s417 = smul.addr %s416, 8
          %s418 = scalar_lea.vmem [#allocation2], %s417
          %419 = dma.done %s415, 128
        $region56: #{lxmert_output.1} parent=51 // pred_fallthru
          _
      $region52: #{lxmert_output.1} parent=5 // pred_fallthru
        _
    $region6: #{lxmert_output.1} parent=1 // loop_footer
      %s19 = sadd.s32 1, %s15
    $region7: #{lxmert_output.1} parent=1 // loop_footer_branch
      %14 = sbr.rel target = $region3
    $region8: #{lxmert_output.1} parent=1 // loop_exit
      _
    %420 = vsyncpa [#allocation3], 1
    %s421 = scalar_lea.sflag [#allocation3], 1
    %422 = vsyncpa %s421, 1

</llo_original>
